<compile_context>
chip_gen: v7x
topology: tpu7x:2x2x1
jax: 0.10.0
libtpu: 0.0.40
codegen_flags: <defaults>
</compile_context>

<pallas_src>
import numpy as np
import jax
import jax.numpy as jnp
from jax.experimental import pallas as pl
from jax.experimental.pallas import tpu as pltpu

# ----------------------------- sizes ---------------------------------------
BATCH = 8       # batch size (one sublane tile)
D_IN = 16       # flattened 4x4 "bars" image
H = 100         # encoder / decoder hidden width
ENC_OUT = 100   # h_enc dim (feeds the mu / log_sigma heads)
LATENT = 8      # VAE latent dim

HP = 128        # lane-padded width (100 -> 128); also the packed output width

# fixed output / intermediate lane layout
MU_LO = 16                   # mu lives in lanes 16..23 of heads AND of the output
SIG_LO = MU_LO + LATENT      # log_sigma / sigma / eps live in lanes 24..31
ONE_LANE = HP - 1            # homogeneous '1' lane carrying the folded biases

# row offsets of each (128,128) weight block inside the packed [640,128] slab
R_WE1 = 0 * HP               # encoder.linear1 (+be1 in row 127)
R_WE2 = 1 * HP               # encoder.linear2 (+be2 in row 127)
R_WHD = 2 * HP               # fused mu|log_sigma heads (+biases in row 127)
R_WD1 = 3 * HP               # decoder.linear1, duplicated for mu / sigma*eps lanes (+bd1)
R_WD2 = 4 * HP               # decoder.linear2 (+bd2 in row 127)
W_ROWS = 5 * HP              # = 640


# ----------------------------- kernel --------------------------------------
def vae_kernel(act_ref, w_ref, out_ref):
    f32 = jnp.float32
    # act: x in lanes 0..15, eps in lanes 24..31, 1.0 in lane 127, zeros elsewhere
    act = act_ref[...]                                   # (8, 128)

    # static, 128-aligned views into the packed weight slab (zero runtime cost)
    we1 = w_ref[R_WE1:R_WE1 + HP, :]                     # (128, 128)
    we2 = w_ref[R_WE2:R_WE2 + HP, :]
    whd = w_ref[R_WHD:R_WHD + HP, :]
    wd1 = w_ref[R_WD1:R_WD1 + HP, :]
    wd2 = w_ref[R_WD2:R_WD2 + HP, :]

    # ---- encoder: relu(x W1 + b1) -> relu(h W2 + b2); biases folded via lane 127
    h1 = jnp.maximum(jnp.dot(act, we1, preferred_element_type=f32), 0.0)
    h_enc = jnp.maximum(jnp.dot(h1, we2, preferred_element_type=f32), 0.0)

    # ---- fused mu / log_sigma heads: mu -> lanes 16..23, log_sigma -> lanes 24..31
    heads = jnp.dot(h_enc, whd, preferred_element_type=f32)     # (8, 128), lane 127 = 1

    # ---- reparameterization without (8,8) extracts: sigma*eps written into the
    #      log_sigma lanes; everything else (mu lanes, homogeneous lane) kept.
    sig_full = jnp.exp(heads)                                   # sigma in lanes 24..31
    lane = jax.lax.broadcasted_iota(jnp.int32, heads.shape, 1)
    mask_mu = (lane >= MU_LO) & (lane < MU_LO + LATENT)
    mask_sig = (lane >= SIG_LO) & (lane < SIG_LO + LATENT)
    t = jnp.where(mask_sig, sig_full * act, heads)              # eps sits in act lanes 24..31

    # ---- decoder (the spec `Decoder` module): relu(z Wd1 + bd1) -> relu(. Wd2 + bd2)
    # wd1 is duplicated over the mu and sigma*eps lanes, so t @ wd1 == z @ wd1 (+bd1).
    d1 = jnp.maximum(jnp.dot(t, wd1, preferred_element_type=f32), 0.0)
    out = jnp.maximum(jnp.dot(d1, wd2, preferred_element_type=f32), 0.0)  # recon in lanes 0..15

    # ---- single lane-dense (8,128) store: [recon | mu | sigma | 0] via lane selects
    out_ref[...] = (out
                    + jnp.where(mask_mu, heads, 0.0)
                    + jnp.where(mask_sig, sig_full, 0.0))


# ----------------------------- wrapper --------------------------------------
@jax.jit
def vae_forward(x, eps, w_slab):
    # host/XLA-side packing of the single activation slab (outside the kernel)
    act = jnp.zeros((BATCH, HP), jnp.float32)
    act = act.at[:, 0:D_IN].set(x)
    act = act.at[:, SIG_LO:SIG_LO + LATENT].set(eps)
    act = act.at[:, ONE_LANE].set(1.0)

    vmem = pl.BlockSpec(memory_space=pltpu.MemorySpace.VMEM)
    packed = pl.pallas_call(
        vae_kernel,
        out_shape=jax.ShapeDtypeStruct((BATCH, HP), jnp.float32),
        in_specs=[vmem, vmem],
        out_specs=vmem,
    )(act, w_slab)

    recon = packed[:, 0:D_IN]
    mu = packed[:, MU_LO:MU_LO + LATENT]
    sigma = packed[:, SIG_LO:SIG_LO + LATENT]
    return recon, mu, sigma


# ----------------------------- params / packing ------------------------------
def init_params(key):
    """Deterministic PyTorch-Linear-style init (uniform +-1/sqrt(fan_in))."""
    def linear(k, fan_in, fan_out):
        kw, kb = jax.random.split(k)
        bound = 1.0 / np.sqrt(fan_in)
        w = jax.random.uniform(kw, (fan_in, fan_out), jnp.float32, -bound, bound)
        b = jax.random.uniform(kb, (1, fan_out), jnp.float32, -bound, bound)
        return w, b

    ks = jax.random.split(key, 6)
    we1, be1 = linear(ks[0], D_IN, H)           # encoder.linear1
    we2, be2 = linear(ks[1], H, ENC_OUT)        # encoder.linear2
    wmu, bmu = linear(ks[2], ENC_OUT, LATENT)   # _enc_mu
    wls, bls = linear(ks[3], ENC_OUT, LATENT)   # _enc_log_sigma
    wd1, bd1 = linear(ks[4], LATENT, H)         # decoder.linear1
    wd2, bd2 = linear(ks[5], H, D_IN)           # decoder.linear2
    return (we1, be1, we2, be2, wmu, bmu, wls, bls, wd1, bd1, wd2, bd2)


def pack_params(params):
    """One-time host-side packing into a single lane-dense f32 weight slab.

    Biases are folded in homogeneous-coordinate style: each (128,128) block has
    its bias in row 127 and (except the last block) a 1.0 at [127,127] so the
    '1' lane propagates through relu to feed the next layer's bias row.
    """
    (we1, be1, we2, be2, wmu, bmu, wls, bls, wd1, bd1, wd2, bd2) = [
        np.asarray(p, np.float32) for p in params]

    def block():
        return np.zeros((HP, HP), np.float32)

    W1 = block()                                   # act (x | eps | 1) -> h1
    W1[0:D_IN, 0:H] = we1
    W1[ONE_LANE, 0:H] = be1[0]
    W1[ONE_LANE, ONE_LANE] = 1.0

    W2 = block()                                   # h1 -> h_enc
    W2[0:H, 0:ENC_OUT] = we2
    W2[ONE_LANE, 0:ENC_OUT] = be2[0]
    W2[ONE_LANE, ONE_LANE] = 1.0

    WH = block()                                   # h_enc -> heads (mu @16..23, log_sigma @24..31)
    WH[0:ENC_OUT, MU_LO:MU_LO + LATENT] = wmu
    WH[0:ENC_OUT, SIG_LO:SIG_LO + LATENT] = wls
    WH[ONE_LANE, MU_LO:MU_LO + LATENT] = bmu[0]
    WH[ONE_LANE, SIG_LO:SIG_LO + LATENT] = bls[0]
    WH[ONE_LANE, ONE_LANE] = 1.0

    WD1 = block()                                  # t (mu + sigma*eps lanes) -> d1; t@WD1 == z@wd1 + bd1
    WD1[MU_LO:MU_LO + LATENT, 0:H] = wd1
    WD1[SIG_LO:SIG_LO + LATENT, 0:H] = wd1
    WD1[ONE_LANE, 0:H] = bd1[0]
    WD1[ONE_LANE, ONE_LANE] = 1.0

    WD2 = block()                                  # d1 -> recon (lanes 0..15)
    WD2[0:H, 0:D_IN] = wd2
    WD2[ONE_LANE, 0:D_IN] = bd2[0]

    # ---- bias-fold invariants: padded rows/lanes must be exactly zero and the
    # bias row exactly at row 127, otherwise the homogeneous '1' leaks into
    # real outputs.
    assert np.all(W1[D_IN:ONE_LANE, :] == 0.0) and np.all(W1[0:D_IN, H:] == 0.0)
    assert W1[ONE_LANE, ONE_LANE] == 1.0 and np.all(W1[ONE_LANE, H:ONE_LANE] == 0.0)
    assert np.all(W2[H:ONE_LANE, :] == 0.0) and np.all(W2[0:H, H:] == 0.0)
    assert W2[ONE_LANE, ONE_LANE] == 1.0
    assert np.all(WH[H:ONE_LANE, :] == 0.0)
    assert np.all(WH[:, 0:MU_LO] == 0.0) and np.all(WH[:, SIG_LO + LATENT:ONE_LANE] == 0.0)
    assert WH[ONE_LANE, ONE_LANE] == 1.0
    assert np.all(WD1[0:MU_LO, :] == 0.0) and np.all(WD1[SIG_LO + LATENT:ONE_LANE, :] == 0.0)
    assert WD1[ONE_LANE, ONE_LANE] == 1.0
    assert np.all(WD2[:, D_IN:] == 0.0) and np.all(WD2[H:ONE_LANE, :] == 0.0)

    w_slab = np.concatenate([W1, W2, WH, WD1, WD2], axis=0)
    assert w_slab.shape == (W_ROWS, HP)
    return jnp.asarray(w_slab)


def reference_forward(x, eps, params):
    (we1, be1, we2, be2, wmu, bmu, wls, bls, wd1, bd1, wd2, bd2) = params
    h1 = jnp.maximum(x @ we1 + be1, 0.0)
    h_enc = jnp.maximum(h1 @ we2 + be2, 0.0)
    mu = h_enc @ wmu + bmu
    sigma = jnp.exp(h_enc @ wls + bls)
    z = mu + sigma * eps
    d1 = jnp.maximum(z @ wd1 + bd1, 0.0)
    out = jnp.maximum(d1 @ wd2 + bd2, 0.0)
    return out, mu, sigma


# ----------------------------- main ------------------------------------------
if __name__ == "__main__":
    key = jax.random.PRNGKey(0)
    k_param, k_x, k_eps = jax.random.split(key, 3)

    params = init_params(k_param)
    w_slab = pack_params(params)

    # synthetic "bars" input: small flattened binary-ish images
    x = (jax.random.uniform(k_x, (BATCH, D_IN), jnp.float32) > 0.5).astype(jnp.float32)
    eps = jax.random.normal(k_eps, (BATCH, LATENT), jnp.float32)

    recon, mu, sigma = vae_forward(x, eps, w_slab)
    recon = jax.block_until_ready(recon)
    mu = jax.block_until_ready(mu)
    sigma = jax.block_until_ready(sigma)

    ref_out, ref_mu, ref_sigma = reference_forward(x, eps, params)
    assert np.allclose(np.asarray(recon), np.asarray(ref_out), atol=1e-5, rtol=1e-5)
    assert np.allclose(np.asarray(mu), np.asarray(ref_mu), atol=1e-5, rtol=1e-5)
    assert np.allclose(np.asarray(sigma), np.asarray(ref_sigma), atol=1e-5, rtol=1e-5)

    print("KERNEL_OK")
</pallas_src>

<mosaic_0001>
module attributes {stable_mosaic.version = 11 : i64} {
  func.func @vae_kernel(%arg0: memref<8x128xf32, #tpu.memory_space<vmem>>, %arg1: memref<640x128xf32, #tpu.memory_space<vmem>>, %arg2: memref<8x128xf32, #tpu.memory_space<vmem>>) attributes {dimension_semantics = [], scalar_prefetch = 0 : i64, scratch_operands = 0 : i64, tpu.core_type = #tpu.core_type<tc>} {
    %c0 = arith.constant 0 : index
    %c0_0 = arith.constant 0 : index
    %0 = vector.load %arg0[%c0, %c0_0] : memref<8x128xf32, #tpu.memory_space<vmem>>, vector<8x128xf32>
    %c0_1 = arith.constant 0 : index
    %c0_2 = arith.constant 0 : index
    %1 = vector.load %arg1[%c0_1, %c0_2] : memref<640x128xf32, #tpu.memory_space<vmem>>, vector<128x128xf32>
    %c128 = arith.constant 128 : index
    %c0_3 = arith.constant 0 : index
    %2 = vector.load %arg1[%c128, %c0_3] : memref<640x128xf32, #tpu.memory_space<vmem>>, vector<128x128xf32>
    %c256 = arith.constant 256 : index
    %c0_4 = arith.constant 0 : index
    %3 = vector.load %arg1[%c256, %c0_4] : memref<640x128xf32, #tpu.memory_space<vmem>>, vector<128x128xf32>
    %c384 = arith.constant 384 : index
    %c0_5 = arith.constant 0 : index
    %4 = vector.load %arg1[%c384, %c0_5] : memref<640x128xf32, #tpu.memory_space<vmem>>, vector<128x128xf32>
    %c512 = arith.constant 512 : index
    %c0_6 = arith.constant 0 : index
    %5 = vector.load %arg1[%c512, %c0_6] : memref<640x128xf32, #tpu.memory_space<vmem>>, vector<128x128xf32>
    %cst = arith.constant dense<0.000000e+00> : vector<8x128xf32>
    %6 = tpu.matmul %0, %1, %cst {dimension_numbers = #tpu.dot_dimension_numbers<[1], [0], [0], [1], [0, 0, 1, 1], [], []>} : vector<8x128xf32>, vector<128x128xf32>, vector<8x128xf32> -> vector<8x128xf32>
    %cst_7 = arith.constant 0.000000e+00 : f32
    %7 = vector.broadcast %cst_7 : f32 to vector<8x128xf32>
    %8 = arith.maximumf %6, %7 : vector<8x128xf32>
    %cst_8 = arith.constant dense<0.000000e+00> : vector<8x128xf32>
    %9 = tpu.matmul %8, %2, %cst_8 {dimension_numbers = #tpu.dot_dimension_numbers<[1], [0], [0], [1], [0, 0, 1, 1], [], []>} : vector<8x128xf32>, vector<128x128xf32>, vector<8x128xf32> -> vector<8x128xf32>
    %cst_9 = arith.constant 0.000000e+00 : f32
    %10 = vector.broadcast %cst_9 : f32 to vector<8x128xf32>
    %11 = arith.maximumf %9, %10 : vector<8x128xf32>
    %cst_10 = arith.constant dense<0.000000e+00> : vector<8x128xf32>
    %12 = tpu.matmul %11, %3, %cst_10 {dimension_numbers = #tpu.dot_dimension_numbers<[1], [0], [0], [1], [0, 0, 1, 1], [], []>} : vector<8x128xf32>, vector<128x128xf32>, vector<8x128xf32> -> vector<8x128xf32>
    %13 = math.exp %12 : vector<8x128xf32>
    %14 = tpu.iota {dimensions = array<i32: 1>} : vector<8x128xi32>
    %c16_i32 = arith.constant 16 : i32
    %15 = vector.broadcast %c16_i32 : i32 to vector<8x128xi32>
    %16 = arith.cmpi sge, %14, %15 : vector<8x128xi32>
    %c24_i32 = arith.constant 24 : i32
    %17 = vector.broadcast %c24_i32 : i32 to vector<8x128xi32>
    %18 = arith.cmpi slt, %14, %17 : vector<8x128xi32>
    %19 = arith.andi %16, %18 : vector<8x128xi1>
    %c24_i32_11 = arith.constant 24 : i32
    %20 = vector.broadcast %c24_i32_11 : i32 to vector<8x128xi32>
    %21 = arith.cmpi sge, %14, %20 : vector<8x128xi32>
    %c32_i32 = arith.constant 32 : i32
    %22 = vector.broadcast %c32_i32 : i32 to vector<8x128xi32>
    %23 = arith.cmpi slt, %14, %22 : vector<8x128xi32>
    %24 = arith.andi %21, %23 : vector<8x128xi1>
    %25 = arith.mulf %13, %0 : vector<8x128xf32>
    %26 = arith.select %24, %25, %12 : vector<8x128xi1>, vector<8x128xf32>
    %cst_12 = arith.constant dense<0.000000e+00> : vector<8x128xf32>
    %27 = tpu.matmul %26, %4, %cst_12 {dimension_numbers = #tpu.dot_dimension_numbers<[1], [0], [0], [1], [0, 0, 1, 1], [], []>} : vector<8x128xf32>, vector<128x128xf32>, vector<8x128xf32> -> vector<8x128xf32>
    %cst_13 = arith.constant 0.000000e+00 : f32
    %28 = vector.broadcast %cst_13 : f32 to vector<8x128xf32>
    %29 = arith.maximumf %27, %28 : vector<8x128xf32>
    %cst_14 = arith.constant dense<0.000000e+00> : vector<8x128xf32>
    %30 = tpu.matmul %29, %5, %cst_14 {dimension_numbers = #tpu.dot_dimension_numbers<[1], [0], [0], [1], [0, 0, 1, 1], [], []>} : vector<8x128xf32>, vector<128x128xf32>, vector<8x128xf32> -> vector<8x128xf32>
    %cst_15 = arith.constant 0.000000e+00 : f32
    %31 = vector.broadcast %cst_15 : f32 to vector<8x128xf32>
    %32 = arith.maximumf %30, %31 : vector<8x128xf32>
    %cst_16 = arith.constant 0.000000e+00 : f32
    %33 = vector.broadcast %cst_16 : f32 to vector<8x128xf32>
    %34 = arith.select %19, %12, %33 : vector<8x128xi1>, vector<8x128xf32>
    %35 = arith.addf %32, %34 : vector<8x128xf32>
    %cst_17 = arith.constant 0.000000e+00 : f32
    %36 = vector.broadcast %cst_17 : f32 to vector<8x128xf32>
    %37 = arith.select %24, %13, %36 : vector<8x128xi1>, vector<8x128xf32>
    %38 = arith.addf %35, %37 : vector<8x128xf32>
    %c0_18 = arith.constant 0 : index
    %c0_19 = arith.constant 0 : index
    %39 = vector.load %arg2[%c0_18, %c0_19] : memref<8x128xf32, #tpu.memory_space<vmem>>, vector<8x128xf32>
    tpu.vector_store %arg2[%c0_18, %c0_19], %38 {strides = array<i32>} : memref<8x128xf32, #tpu.memory_space<vmem>>, vector<8x128xf32>,
    return
  }
}

</mosaic_0001>

<llo_original>
// kernel: vae_forward.1
$region0: #{vae_forward.1}
  #allocation0 [shape = 'u32[]', space=smem, size = 0x4, offset = 0x4, fixed_abs, tag = 'smem constant byte address 0x4 - core index']
  #allocation1 [shape = 'u32[144,128]{1,0:T(1,128)}', space=vmem, size = 0x12000, scoped, tag = 'internal scratch']
  %s0 = inlined_call_operand.vmem [shape: f32[8,128], index: 0, kind: input, shape index: {}]
  %s1 = inlined_call_operand.hbm [shape: f32[640,128], index: 1, kind: input, shape index: {}]
  %s2 = inlined_call_operand.vmem [shape: f32[8,128], index: 2, kind: output, shape index: {}]
  %s3 = sld [smem:[#allocation0]]
  $region22: #{vae_forward.1} parent=0
    _
  %s5 = ssub.s32 1, %s3
  %s6 = scalar_select 0, %s5, %s3
  $region1: #{vae_forward.1} parent=0
    #allocation2 [shape = 'u8[327680]{0}', space=vmem, size = 0x50000, scoped, tag = 'input window, operand 1, single buffered']
    #allocation3 [shape = 's32[1]{0}', space=sflag, size = 0x4, scoped, tag = 'scoped memory for vae_forward.1']
    %7 = vsyncpa [#allocation3], 0
    // Predicated region
    $region2: #{vae_forward.1} parent=1 // pred_check
      _
    $region3: #{vae_forward.1} parent=1 // pred_check_branch
      %9 = sbr.rel (0) target = $region5
    $region4: #{vae_forward.1} parent=1 // pred_region
      _
    $region5: #{vae_forward.1} parent=1 // pred_fallthru
      _
    // Predicated region
    $region6: #{vae_forward.1} parent=1 // pred_check
      _
    $region7: #{vae_forward.1} parent=1 // pred_check_branch
      %11 = sbr.rel (0) target = $region9
    $region8: #{vae_forward.1} parent=1 // pred_region
      %s13 = ssub.s32 10240, 10240
      %14 = vsyncadd [#allocation3], %s13
      %s15 = sshll.u32 [#allocation2], 4
      %s16 = int_to_ptr.vmem [resolvable:$true] %s15
      %21 = dma.hbm_to_vmem [thread:$0]  %s1, 10240, %s16, [#allocation3], 128, 128, 8
    $region9: #{vae_forward.1} parent=1 // pred_fallthru
      _
    // Predicated region
    $region10: #{vae_forward.1} parent=1 // pred_check
      _
    $region11: #{vae_forward.1} parent=1 // pred_check_branch
      %23 = sbr.rel (0) target = $region13
    $region12: #{vae_forward.1} parent=1 // pred_region
      %24 = dma.done [#allocation3], 10240
    $region13: #{vae_forward.1} parent=1 // pred_fallthru
      _
    %v25 = vld [vmem:[%s0] sm:$0xff]
    %v26 = vld [vmem:[#allocation2] sm:$0xff]
    %v27 = vld [vmem:[#allocation2 + $0x8] sm:$0xff]
    %v28 = vld [vmem:[#allocation2 + $0x10] sm:$0xff]
    %v29 = vld [vmem:[#allocation2 + $0x18] sm:$0xff]
    %v30 = vld [vmem:[#allocation2 + $0x20] sm:$0xff]
    %v31 = vld [vmem:[#allocation2 + $0x28] sm:$0xff]
    %v32 = vld [vmem:[#allocation2 + $0x30] sm:$0xff]
    %v33 = vld [vmem:[#allocation2 + $0x38] sm:$0xff]
    %v34 = vld [vmem:[#allocation2 + $0x40] sm:$0xff]
    %v35 = vld [vmem:[#allocation2 + $0x48] sm:$0xff]
    %v36 = vld [vmem:[#allocation2 + $0x50] sm:$0xff]
    %v37 = vld [vmem:[#allocation2 + $0x58] sm:$0xff]
    %v38 = vld [vmem:[#allocation2 + $0x60] sm:$0xff]
    %v39 = vld [vmem:[#allocation2 + $0x68] sm:$0xff]
    %v40 = vld [vmem:[#allocation2 + $0x70] sm:$0xff]
    %v41 = vld [vmem:[#allocation2 + $0x78] sm:$0xff]
    %v42 = vld [vmem:[#allocation2 + $0x80] sm:$0xff]
    %v43 = vld [vmem:[#allocation2 + $0x88] sm:$0xff]
    %v44 = vld [vmem:[#allocation2 + $0x90] sm:$0xff]
    %v45 = vld [vmem:[#allocation2 + $0x98] sm:$0xff]
    %v46 = vld [vmem:[#allocation2 + $0xa0] sm:$0xff]
    %v47 = vld [vmem:[#allocation2 + $0xa8] sm:$0xff]
    %v48 = vld [vmem:[#allocation2 + $0xb0] sm:$0xff]
    %v49 = vld [vmem:[#allocation2 + $0xb8] sm:$0xff]
    %v50 = vld [vmem:[#allocation2 + $0xc0] sm:$0xff]
    %v51 = vld [vmem:[#allocation2 + $0xc8] sm:$0xff]
    %v52 = vld [vmem:[#allocation2 + $0xd0] sm:$0xff]
    %v53 = vld [vmem:[#allocation2 + $0xd8] sm:$0xff]
    %v54 = vld [vmem:[#allocation2 + $0xe0] sm:$0xff]
    %v55 = vld [vmem:[#allocation2 + $0xe8] sm:$0xff]
    %v56 = vld [vmem:[#allocation2 + $0xf0] sm:$0xff]
    %v57 = vld [vmem:[#allocation2 + $0xf8] sm:$0xff]
    %v58 = vld [vmem:[#allocation2 + $0x100] sm:$0xff]
    %v59 = vld [vmem:[#allocation2 + $0x108] sm:$0xff]
    %v60 = vld [vmem:[#allocation2 + $0x110] sm:$0xff]
    %v61 = vld [vmem:[#allocation2 + $0x118] sm:$0xff]
    %v62 = vld [vmem:[#allocation2 + $0x120] sm:$0xff]
    %v63 = vld [vmem:[#allocation2 + $0x128] sm:$0xff]
    %v64 = vld [vmem:[#allocation2 + $0x130] sm:$0xff]
    %v65 = vld [vmem:[#allocation2 + $0x138] sm:$0xff]
    %v66 = vld [vmem:[#allocation2 + $0x140] sm:$0xff]
    %v67 = vld [vmem:[#allocation2 + $0x148] sm:$0xff]
    %v68 = vld [vmem:[#allocation2 + $0x150] sm:$0xff]
    %v69 = vld [vmem:[#allocation2 + $0x158] sm:$0xff]
    %v70 = vld [vmem:[#allocation2 + $0x160] sm:$0xff]
    %v71 = vld [vmem:[#allocation2 + $0x168] sm:$0xff]
    %v72 = vld [vmem:[#allocation2 + $0x170] sm:$0xff]
    %v73 = vld [vmem:[#allocation2 + $0x178] sm:$0xff]
    %v74 = vld [vmem:[#allocation2 + $0x180] sm:$0xff]
    %v75 = vld [vmem:[#allocation2 + $0x188] sm:$0xff]
    %v76 = vld [vmem:[#allocation2 + $0x190] sm:$0xff]
    %v77 = vld [vmem:[#allocation2 + $0x198] sm:$0xff]
    %v78 = vld [vmem:[#allocation2 + $0x1a0] sm:$0xff]
    %v79 = vld [vmem:[#allocation2 + $0x1a8] sm:$0xff]
    %v80 = vld [vmem:[#allocation2 + $0x1b0] sm:$0xff]
    %v81 = vld [vmem:[#allocation2 + $0x1b8] sm:$0xff]
    %v82 = vld [vmem:[#allocation2 + $0x1c0] sm:$0xff]
    %v83 = vld [vmem:[#allocation2 + $0x1c8] sm:$0xff]
    %v84 = vld [vmem:[#allocation2 + $0x1d0] sm:$0xff]
    %v85 = vld [vmem:[#allocation2 + $0x1d8] sm:$0xff]
    %v86 = vld [vmem:[#allocation2 + $0x1e0] sm:$0xff]
    %v87 = vld [vmem:[#allocation2 + $0x1e8] sm:$0xff]
    %v88 = vld [vmem:[#allocation2 + $0x1f0] sm:$0xff]
    %v89 = vld [vmem:[#allocation2 + $0x1f8] sm:$0xff]
    %v90 = vld [vmem:[#allocation2 + $0x200] sm:$0xff]
    %v91 = vld [vmem:[#allocation2 + $0x208] sm:$0xff]
    %v92 = vld [vmem:[#allocation2 + $0x210] sm:$0xff]
    %v93 = vld [vmem:[#allocation2 + $0x218] sm:$0xff]
    %v94 = vld [vmem:[#allocation2 + $0x220] sm:$0xff]
    %v95 = vld [vmem:[#allocation2 + $0x228] sm:$0xff]
    %v96 = vld [vmem:[#allocation2 + $0x230] sm:$0xff]
    %v97 = vld [vmem:[#allocation2 + $0x238] sm:$0xff]
    %v98 = vld [vmem:[#allocation2 + $0x240] sm:$0xff]
    %v99 = vld [vmem:[#allocation2 + $0x248] sm:$0xff]
    %v100 = vld [vmem:[#allocation2 + $0x250] sm:$0xff]
    %v101 = vld [vmem:[#allocation2 + $0x258] sm:$0xff]
    %v102 = vld [vmem:[#allocation2 + $0x260] sm:$0xff]
    %v103 = vld [vmem:[#allocation2 + $0x268] sm:$0xff]
    %v104 = vld [vmem:[#allocation2 + $0x270] sm:$0xff]
    %v105 = vld [vmem:[#allocation2 + $0x278] sm:$0xff]
    %106 = vmatprep.subr.mxu0 0.0
    %107 = vmatpush1.msra.mxu0 %v26
    %108 = vmatprep.subr.mxu0 0.0
    %109 = vmatpush1.msra.mxu0 %v27
    %110 = vmatprep.subr.mxu0 0.0
    %111 = vmatpush1.msra.mxu0 %v28
    %112 = vmatprep.subr.mxu0 0.0
    %113 = vmatpush1.msra.mxu0 %v29
    %114 = vmatprep.subr.mxu0 0.0
    %115 = vmatpush1.msra.mxu0 %v30
    %116 = vmatprep.subr.mxu0 0.0
    %117 = vmatpush1.msra.mxu0 %v31
    %118 = vmatprep.subr.mxu0 0.0
    %119 = vmatpush1.msra.mxu0 %v32
    %120 = vmatprep.subr.mxu0 0.0
    %121 = vmatpush1.msra.mxu0 %v33
    %122 = vmatprep.subr.mxu0 0.0
    %123 = vmatpush1.msra.mxu0 %v34
    %124 = vmatprep.subr.mxu0 0.0
    %125 = vmatpush1.msra.mxu0 %v35
    %126 = vmatprep.subr.mxu0 0.0
    %127 = vmatpush1.msra.mxu0 %v36
    %128 = vmatprep.subr.mxu0 0.0
    %129 = vmatpush1.msra.mxu0 %v37
    %130 = vmatprep.subr.mxu0 0.0
    %131 = vmatpush1.msra.mxu0 %v38
    %132 = vmatprep.subr.mxu0 0.0
    %133 = vmatpush1.msra.mxu0 %v39
    %134 = vmatprep.subr.mxu0 0.0
    %135 = vmatpush1.msra.mxu0 %v40
    %136 = vmatprep.subr.mxu0 0.0
    %137 = vmatpush1.msra.mxu0 %v41
    %138 = vmatprep.subr.mxu0 0.0
    %139 = vmatpush1.msra.mxu0 0.0
    %140 = vmatprep.subr.mxu0 0.0
    %141 = vmatpush1.msra.mxu0 0.0
    %142 = vmatprep.subr.mxu0 0.0
    %143 = vmatpush1.msra.mxu0 0.0
    %144 = vmatprep.subr.mxu0 0.0
    %145 = vmatpush1.msra.mxu0 0.0
    %146 = vmatprep.subr.mxu0 0.0
    %147 = vmatpush1.msra.mxu0 0.0
    %148 = vmatprep.subr.mxu0 0.0
    %149 = vmatpush1.msra.mxu0 0.0
    %150 = vmatprep.subr.mxu0 0.0
    %151 = vmatpush1.msra.mxu0 0.0
    %152 = vmatprep.subr.mxu0 0.0
    %153 = vmatpush1.msra.mxu0 0.0
    %154 = vmatprep.subr.mxu0 0.0
    %155 = vmatpush1.msra.mxu0 0.0
    %156 = vmatprep.subr.mxu0 0.0
    %157 = vmatpush1.msra.mxu0 0.0
    %158 = vmatprep.subr.mxu0 0.0
    %159 = vmatpush1.msra.mxu0 0.0
    %160 = vmatprep.subr.mxu0 0.0
    %161 = vmatpush1.msra.mxu0 0.0
    %162 = vmatprep.subr.mxu0 0.0
    %163 = vmatpush1.msra.mxu0 0.0
    %164 = vmatprep.subr.mxu0 0.0
    %165 = vmatpush1.msra.mxu0 0.0
    %166 = vmatprep.subr.mxu0 0.0
    %167 = vmatpush1.msra.mxu0 0.0
    %168 = vmatprep.subr.mxu0 0.0
    %169 = vmatpush1.msra.mxu0 0.0
    %170 = vmatprep.mubr.f32.mxu0 0.0
    %171 = vmatmul.mubr.f32.gmra.mrb[0].mxu0 %v25
    %v172 = vpop.f32.mrb[0].mxu0
    %v173 = vadd.f32 0.0, %v172
    %v174 = vpop.f32.mrb[0].mxu0
    %175 = vdwg.mxu0
    %v176 = vmax.f32 %v173, 0.0
    %177 = vmatprep.subr.mxu0 0.0
    %178 = vmatpush1.msra.mxu0 %v42
    %179 = vmatprep.subr.mxu0 0.0
    %180 = vmatpush1.msra.mxu0 %v43
    %181 = vmatprep.subr.mxu0 0.0
    %182 = vmatpush1.msra.mxu0 %v44
    %183 = vmatprep.subr.mxu0 0.0
    %184 = vmatpush1.msra.mxu0 %v45
    %185 = vmatprep.subr.mxu0 0.0
    %186 = vmatpush1.msra.mxu0 %v46
    %187 = vmatprep.subr.mxu0 0.0
    %188 = vmatpush1.msra.mxu0 %v47
    %189 = vmatprep.subr.mxu0 0.0
    %190 = vmatpush1.msra.mxu0 %v48
    %191 = vmatprep.subr.mxu0 0.0
    %192 = vmatpush1.msra.mxu0 %v49
    %193 = vmatprep.subr.mxu0 0.0
    %194 = vmatpush1.msra.mxu0 %v50
    %195 = vmatprep.subr.mxu0 0.0
    %196 = vmatpush1.msra.mxu0 %v51
    %197 = vmatprep.subr.mxu0 0.0
    %198 = vmatpush1.msra.mxu0 %v52
    %199 = vmatprep.subr.mxu0 0.0
    %200 = vmatpush1.msra.mxu0 %v53
    %201 = vmatprep.subr.mxu0 0.0
    %202 = vmatpush1.msra.mxu0 %v54
    %203 = vmatprep.subr.mxu0 0.0
    %204 = vmatpush1.msra.mxu0 %v55
    %205 = vmatprep.subr.mxu0 0.0
    %206 = vmatpush1.msra.mxu0 %v56
    %207 = vmatprep.subr.mxu0 0.0
    %208 = vmatpush1.msra.mxu0 %v57
    %209 = vmatprep.subr.mxu0 0.0
    %210 = vmatpush1.msra.mxu0 0.0
    %211 = vmatprep.subr.mxu0 0.0
    %212 = vmatpush1.msra.mxu0 0.0
    %213 = vmatprep.subr.mxu0 0.0
    %214 = vmatpush1.msra.mxu0 0.0
    %215 = vmatprep.subr.mxu0 0.0
    %216 = vmatpush1.msra.mxu0 0.0
    %217 = vmatprep.subr.mxu0 0.0
    %218 = vmatpush1.msra.mxu0 0.0
    %219 = vmatprep.subr.mxu0 0.0
    %220 = vmatpush1.msra.mxu0 0.0
    %221 = vmatprep.subr.mxu0 0.0
    %222 = vmatpush1.msra.mxu0 0.0
    %223 = vmatprep.subr.mxu0 0.0
    %224 = vmatpush1.msra.mxu0 0.0
    %225 = vmatprep.subr.mxu0 0.0
    %226 = vmatpush1.msra.mxu0 0.0
    %227 = vmatprep.subr.mxu0 0.0
    %228 = vmatpush1.msra.mxu0 0.0
    %229 = vmatprep.subr.mxu0 0.0
    %230 = vmatpush1.msra.mxu0 0.0
    %231 = vmatprep.subr.mxu0 0.0
    %232 = vmatpush1.msra.mxu0 0.0
    %233 = vmatprep.subr.mxu0 0.0
    %234 = vmatpush1.msra.mxu0 0.0
    %235 = vmatprep.subr.mxu0 0.0
    %236 = vmatpush1.msra.mxu0 0.0
    %237 = vmatprep.subr.mxu0 0.0
    %238 = vmatpush1.msra.mxu0 0.0
    %239 = vmatprep.subr.mxu0 0.0
    %240 = vmatpush1.msra.mxu0 0.0
    %241 = vmatprep.mubr.f32.mxu0 0.0
    %242 = vmatmul.mubr.f32.gmra.mrb[0].mxu0 %v176
    %v243 = vpop.f32.mrb[0].mxu0
    %v244 = vadd.f32 0.0, %v243
    %v245 = vpop.f32.mrb[0].mxu0
    %246 = vdwg.mxu0
    %v247 = vmax.f32 %v244, 0.0
    %248 = vmatprep.subr.mxu0 0.0
    %249 = vmatpush1.msra.mxu0 %v58
    %250 = vmatprep.subr.mxu0 0.0
    %251 = vmatpush1.msra.mxu0 %v59
    %252 = vmatprep.subr.mxu0 0.0
    %253 = vmatpush1.msra.mxu0 %v60
    %254 = vmatprep.subr.mxu0 0.0
    %255 = vmatpush1.msra.mxu0 %v61
    %256 = vmatprep.subr.mxu0 0.0
    %257 = vmatpush1.msra.mxu0 %v62
    %258 = vmatprep.subr.mxu0 0.0
    %259 = vmatpush1.msra.mxu0 %v63
    %260 = vmatprep.subr.mxu0 0.0
    %261 = vmatpush1.msra.mxu0 %v64
    %262 = vmatprep.subr.mxu0 0.0
    %263 = vmatpush1.msra.mxu0 %v65
    %264 = vmatprep.subr.mxu0 0.0
    %265 = vmatpush1.msra.mxu0 %v66
    %266 = vmatprep.subr.mxu0 0.0
    %267 = vmatpush1.msra.mxu0 %v67
    %268 = vmatprep.subr.mxu0 0.0
    %269 = vmatpush1.msra.mxu0 %v68
    %270 = vmatprep.subr.mxu0 0.0
    %271 = vmatpush1.msra.mxu0 %v69
    %272 = vmatprep.subr.mxu0 0.0
    %273 = vmatpush1.msra.mxu0 %v70
    %274 = vmatprep.subr.mxu0 0.0
    %275 = vmatpush1.msra.mxu0 %v71
    %276 = vmatprep.subr.mxu0 0.0
    %277 = vmatpush1.msra.mxu0 %v72
    %278 = vmatprep.subr.mxu0 0.0
    %279 = vmatpush1.msra.mxu0 %v73
    %280 = vmatprep.subr.mxu0 0.0
    %281 = vmatpush1.msra.mxu0 0.0
    %282 = vmatprep.subr.mxu0 0.0
    %283 = vmatpush1.msra.mxu0 0.0
    %284 = vmatprep.subr.mxu0 0.0
    %285 = vmatpush1.msra.mxu0 0.0
    %286 = vmatprep.subr.mxu0 0.0
    %287 = vmatpush1.msra.mxu0 0.0
    %288 = vmatprep.subr.mxu0 0.0
    %289 = vmatpush1.msra.mxu0 0.0
    %290 = vmatprep.subr.mxu0 0.0
    %291 = vmatpush1.msra.mxu0 0.0
    %292 = vmatprep.subr.mxu0 0.0
    %293 = vmatpush1.msra.mxu0 0.0
    %294 = vmatprep.subr.mxu0 0.0
    %295 = vmatpush1.msra.mxu0 0.0
    %296 = vmatprep.subr.mxu0 0.0
    %297 = vmatpush1.msra.mxu0 0.0
    %298 = vmatprep.subr.mxu0 0.0
    %299 = vmatpush1.msra.mxu0 0.0
    %300 = vmatprep.subr.mxu0 0.0
    %301 = vmatpush1.msra.mxu0 0.0
    %302 = vmatprep.subr.mxu0 0.0
    %303 = vmatpush1.msra.mxu0 0.0
    %304 = vmatprep.subr.mxu0 0.0
    %305 = vmatpush1.msra.mxu0 0.0
    %306 = vmatprep.subr.mxu0 0.0
    %307 = vmatpush1.msra.mxu0 0.0
    %308 = vmatprep.subr.mxu0 0.0
    %309 = vmatpush1.msra.mxu0 0.0
    %310 = vmatprep.subr.mxu0 0.0
    %311 = vmatpush1.msra.mxu0 0.0
    %312 = vmatprep.mubr.f32.mxu0 0.0
    %313 = vmatmul.mubr.f32.gmra.mrb[0].mxu0 %v247
    %v314 = vpop.f32.mrb[0].mxu0
    %v315 = vadd.f32 0.0, %v314
    %v316 = vpop.f32.mrb[0].mxu0
    %317 = vdwg.mxu0
    %v318 = vmul.f32 %v315, 1.442695
    %v319 = vpow.pop %v318
    %v320 = vlaneseq
    %v321 = vand.u32 %v320, 127
    %vm322 = vcmp.ge.s32.totalorder %v321, 16
    %vm323 = vcmp.lt.s32.totalorder %v321, 24
    %vm324 = vmand %vm322, %vm323
    %vm325 = vcmp.ge.s32.totalorder %v321, 24
    %vm326 = vcmp.lt.s32.totalorder %v321, 32
    %vm327 = vmand %vm325, %vm326
    %v328 = vmul.f32 %v319, %v25
    %v329 = vsel %vm327, %v328, %v315
    %330 = vmatprep.subr.mxu0 0.0
    %331 = vmatpush1.msra.mxu0 %v74
    %332 = vmatprep.subr.mxu0 0.0
    %333 = vmatpush1.msra.mxu0 %v75
    %334 = vmatprep.subr.mxu0 0.0
    %335 = vmatpush1.msra.mxu0 %v76
    %336 = vmatprep.subr.mxu0 0.0
    %337 = vmatpush1.msra.mxu0 %v77
    %338 = vmatprep.subr.mxu0 0.0
    %339 = vmatpush1.msra.mxu0 %v78
    %340 = vmatprep.subr.mxu0 0.0
    %341 = vmatpush1.msra.mxu0 %v79
    %342 = vmatprep.subr.mxu0 0.0
    %343 = vmatpush1.msra.mxu0 %v80
    %344 = vmatprep.subr.mxu0 0.0
    %345 = vmatpush1.msra.mxu0 %v81
    %346 = vmatprep.subr.mxu0 0.0
    %347 = vmatpush1.msra.mxu0 %v82
    %348 = vmatprep.subr.mxu0 0.0
    %349 = vmatpush1.msra.mxu0 %v83
    %350 = vmatprep.subr.mxu0 0.0
    %351 = vmatpush1.msra.mxu0 %v84
    %352 = vmatprep.subr.mxu0 0.0
    %353 = vmatpush1.msra.mxu0 %v85
    %354 = vmatprep.subr.mxu0 0.0
    %355 = vmatpush1.msra.mxu0 %v86
    %356 = vmatprep.subr.mxu0 0.0
    %357 = vmatpush1.msra.mxu0 %v87
    %358 = vmatprep.subr.mxu0 0.0
    %359 = vmatpush1.msra.mxu0 %v88
    %360 = vmatprep.subr.mxu0 0.0
    %361 = vmatpush1.msra.mxu0 %v89
    %362 = vmatprep.subr.mxu0 0.0
    %363 = vmatpush1.msra.mxu0 0.0
    %364 = vmatprep.subr.mxu0 0.0
    %365 = vmatpush1.msra.mxu0 0.0
    %366 = vmatprep.subr.mxu0 0.0
    %367 = vmatpush1.msra.mxu0 0.0
    %368 = vmatprep.subr.mxu0 0.0
    %369 = vmatpush1.msra.mxu0 0.0
    %370 = vmatprep.subr.mxu0 0.0
    %371 = vmatpush1.msra.mxu0 0.0
    %372 = vmatprep.subr.mxu0 0.0
    %373 = vmatpush1.msra.mxu0 0.0
    %374 = vmatprep.subr.mxu0 0.0
    %375 = vmatpush1.msra.mxu0 0.0
    %376 = vmatprep.subr.mxu0 0.0
    %377 = vmatpush1.msra.mxu0 0.0
    %378 = vmatprep.subr.mxu0 0.0
    %379 = vmatpush1.msra.mxu0 0.0
    %380 = vmatprep.subr.mxu0 0.0
    %381 = vmatpush1.msra.mxu0 0.0
    %382 = vmatprep.subr.mxu0 0.0
    %383 = vmatpush1.msra.mxu0 0.0
    %384 = vmatprep.subr.mxu0 0.0
    %385 = vmatpush1.msra.mxu0 0.0
    %386 = vmatprep.subr.mxu0 0.0
    %387 = vmatpush1.msra.mxu0 0.0
    %388 = vmatprep.subr.mxu0 0.0
    %389 = vmatpush1.msra.mxu0 0.0
    %390 = vmatprep.subr.mxu0 0.0
    %391 = vmatpush1.msra.mxu0 0.0
    %392 = vmatprep.subr.mxu0 0.0
    %393 = vmatpush1.msra.mxu0 0.0
    %394 = vmatprep.mubr.f32.mxu0 0.0
    %395 = vmatmul.mubr.f32.gmra.mrb[0].mxu0 %v329
    %v396 = vpop.f32.mrb[0].mxu0
    %v397 = vadd.f32 0.0, %v396
    %v398 = vpop.f32.mrb[0].mxu0
    %399 = vdwg.mxu0
    %v400 = vmax.f32 %v397, 0.0
    %401 = vmatprep.subr.mxu0 0.0
    %402 = vmatpush1.msra.mxu0 %v90
    %403 = vmatprep.subr.mxu0 0.0
    %404 = vmatpush1.msra.mxu0 %v91
    %405 = vmatprep.subr.mxu0 0.0
    %406 = vmatpush1.msra.mxu0 %v92
    %407 = vmatprep.subr.mxu0 0.0
    %408 = vmatpush1.msra.mxu0 %v93
    %409 = vmatprep.subr.mxu0 0.0
    %410 = vmatpush1.msra.mxu0 %v94
    %411 = vmatprep.subr.mxu0 0.0
    %412 = vmatpush1.msra.mxu0 %v95
    %413 = vmatprep.subr.mxu0 0.0
    %414 = vmatpush1.msra.mxu0 %v96
    %415 = vmatprep.subr.mxu0 0.0
    %416 = vmatpush1.msra.mxu0 %v97
    %417 = vmatprep.subr.mxu0 0.0
    %418 = vmatpush1.msra.mxu0 %v98
    %419 = vmatprep.subr.mxu0 0.0
    %420 = vmatpush1.msra.mxu0 %v99
    %421 = vmatprep.subr.mxu0 0.0
    %422 = vmatpush1.msra.mxu0 %v100
    %423 = vmatprep.subr.mxu0 0.0
    %424 = vmatpush1.msra.mxu0 %v101
    %425 = vmatprep.subr.mxu0 0.0
    %426 = vmatpush1.msra.mxu0 %v102
    %427 = vmatprep.subr.mxu0 0.0
    %428 = vmatpush1.msra.mxu0 %v103
    %429 = vmatprep.subr.mxu0 0.0
    %430 = vmatpush1.msra.mxu0 %v104
    %431 = vmatprep.subr.mxu0 0.0
    %432 = vmatpush1.msra.mxu0 %v105
    %433 = vmatprep.subr.mxu0 0.0
    %434 = vmatpush1.msra.mxu0 0.0
    %435 = vmatprep.subr.mxu0 0.0
    %436 = vmatpush1.msra.mxu0 0.0
    %437 = vmatprep.subr.mxu0 0.0
    %438 = vmatpush1.msra.mxu0 0.0
    %439 = vmatprep.subr.mxu0 0.0
    %440 = vmatpush1.msra.mxu0 0.0
    %441 = vmatprep.subr.mxu0 0.0
    %442 = vmatpush1.msra.mxu0 0.0
    %443 = vmatprep.subr.mxu0 0.0
    %444 = vmatpush1.msra.mxu0 0.0
    %445 = vmatprep.subr.mxu0 0.0
    %446 = vmatpush1.msra.mxu0 0.0
    %447 = vmatprep.subr.mxu0 0.0
    %448 = vmatpush1.msra.mxu0 0.0
    %449 = vmatprep.subr.mxu0 0.0
    %450 = vmatpush1.msra.mxu0 0.0
    %451 = vmatprep.subr.mxu0 0.0
    %452 = vmatpush1.msra.mxu0 0.0
    %453 = vmatprep.subr.mxu0 0.0
    %454 = vmatpush1.msra.mxu0 0.0
    %455 = vmatprep.subr.mxu0 0.0
    %456 = vmatpush1.msra.mxu0 0.0
    %457 = vmatprep.subr.mxu0 0.0
    %458 = vmatpush1.msra.mxu0 0.0
    %459 = vmatprep.subr.mxu0 0.0
    %460 = vmatpush1.msra.mxu0 0.0
    %461 = vmatprep.subr.mxu0 0.0
    %462 = vmatpush1.msra.mxu0 0.0
    %463 = vmatprep.subr.mxu0 0.0
    %464 = vmatpush1.msra.mxu0 0.0
    %465 = vmatprep.mubr.f32.mxu0 0.0
    %466 = vmatmul.mubr.f32.gmra.mrb[0].mxu0 %v400
    %v467 = vpop.f32.mrb[0].mxu0
    %v468 = vadd.f32 0.0, %v467
    %v469 = vpop.f32.mrb[0].mxu0
    %470 = vdwg.mxu0
    %v471 = vmax.f32 %v468, 0.0
    %v472 = vsel %vm324, %v315, 0.0
    %v473 = vadd.f32 %v471, %v472
    %v474 = vsel %vm327, %v319, 0.0
    %v475 = vadd.f32 %v473, %v474
    %476 = vst [vmem:[%s2] sm:$0xff] %v475
    // Predicated region
    $region14: #{vae_forward.1} parent=1 // pred_check
      _
    $region15: #{vae_forward.1} parent=1 // pred_check_branch
      %478 = sbr.rel (0) target = $region17
    $region16: #{vae_forward.1} parent=1 // pred_region
      _
    $region17: #{vae_forward.1} parent=1 // pred_fallthru
      _
    // Predicated region
    $region18: #{vae_forward.1} parent=1 // pred_check
      _
    $region19: #{vae_forward.1} parent=1 // pred_check_branch
      %480 = sbr.rel (0) target = $region21
    $region20: #{vae_forward.1} parent=1 // pred_region
      _
    $region21: #{vae_forward.1} parent=1 // pred_fallthru
      _
    %481 = vsyncpa [#allocation3], 1

</llo_original>
